<compile_context>
chip_gen: v5e
topology: v5e:2x2
jax: 0.10.0
libtpu: 0.0.40
codegen_flags: <defaults>
</compile_context>

<pallas_src>
import jax
import jax.numpy as jnp
from jax.experimental import pallas as pl
from jax.experimental.pallas import tpu as pltpu


def _make_slice_rows_dma_kernel(row_splits):
    """Build a kernel that copies weight rows [0, row_splits[-1]) HBM->HBM
    as len(row_splits)-1 concurrent contiguous DMAs (start all, wait all)."""
    n_chunks = len(row_splits) - 1

    def kernel(w_hbm, o_hbm, sems):
        # w_hbm : (max_seq_length, embedding_dim) ref left in HBM (pl.ANY)
        # o_hbm : (n_timesteps,   embedding_dim) ref left in HBM (pl.ANY)
        copies = []
        for c in range(n_chunks):
            r0 = row_splits[c]
            nr = row_splits[c + 1] - r0
            cp = pltpu.make_async_copy(
                w_hbm.at[pl.ds(r0, nr), :],
                o_hbm.at[pl.ds(r0, nr), :],
                sems.at[c],
            )
            cp.start()
            copies.append(cp)
        for cp in copies:
            cp.wait()

    return kernel, n_chunks


def learned_pos_embedding(
    weight: jax.Array,
    n_timesteps: int,
    *,
    force_kernel: bool = False,
    num_dma_chunks: int | None = None,
):
    """Return weight[:n_timesteps] (LearnedPosEmbedding.forward).

    weight         : (max_seq_length, embedding_dim) embedding table
    n_timesteps    : static Python int, number of leading rows to return
    force_kernel   : if False (default) small/fusable cases use a plain XLA
                     slice, which beats any kernel launch and lets XLA fuse
                     the slice into the consumer.
    num_dma_chunks : override the number of concurrent DMA descriptors used
                     by the kernel path (auto-chosen from the copy size when
                     None; >1 mainly helps very large copies on v7x).
    """
    max_seq_length, embedding_dim = weight.shape
    assert 0 < n_timesteps <= max_seq_length

    # Full-table request: no bytes need to move at all.
    if n_timesteps == max_seq_length and not force_kernel:
        return weight

    nbytes = n_timesteps * embedding_dim * weight.dtype.itemsize

    # Kernel launch + DMA setup is microseconds; don't pay it to move a few
    # KiB, and let XLA fuse the slice into whatever consumes it.
    if not force_kernel and nbytes < (1 << 20):
        return weight[:n_timesteps]

    # Choose DMA descriptor count: 1 for small copies, up to 4 concurrent
    # contiguous chunks for large ones (helps saturate v7x HBM; harmless
    # elsewhere).
    if num_dma_chunks is None:
        num_dma_chunks = 4 if nbytes >= (4 << 20) else 1
    num_dma_chunks = max(1, min(num_dma_chunks, n_timesteps))

    rows_per_chunk = pl.cdiv(n_timesteps, num_dma_chunks)
    row_splits = [min(c * rows_per_chunk, n_timesteps) for c in range(num_dma_chunks)]
    row_splits.append(n_timesteps)
    # Drop any empty trailing chunks (possible when n_timesteps is tiny).
    row_splits = sorted(set(row_splits))

    kernel, n_chunks = _make_slice_rows_dma_kernel(tuple(row_splits))

    return pl.pallas_call(
        kernel,
        out_shape=jax.ShapeDtypeStruct((n_timesteps, embedding_dim), weight.dtype),
        in_specs=[pl.BlockSpec(memory_space=pl.ANY)],   # keep table in HBM
        out_specs=pl.BlockSpec(memory_space=pl.ANY),    # write output directly in HBM
        scratch_shapes=[pltpu.SemaphoreType.DMA((n_chunks,))],
    )(weight)


if __name__ == "__main__":
    # Module config (synthetic, deterministic init like nn.Embedding ~ N(0, 1)).
    max_seq_length = 16
    embedding_dim = 32
    n_timesteps = 8  # "seq" length requested in forward

    key = jax.random.PRNGKey(0)
    pos_emb_weight = jax.random.normal(
        key, (max_seq_length, embedding_dim), dtype=jnp.float32
    )

    ref = pos_emb_weight[:n_timesteps]

    # 1) Default path (what real pipelines should use): plain XLA slice / alias.
    out_default = jax.block_until_ready(
        learned_pos_embedding(pos_emb_weight, n_timesteps)
    )
    assert out_default.shape == (n_timesteps, embedding_dim)
    assert out_default.dtype == jnp.float32
    assert bool(jnp.array_equal(out_default, ref))

    # 2) Force the Pallas kernel, single-descriptor DMA path.
    out_k1 = jax.block_until_ready(
        learned_pos_embedding(pos_emb_weight, n_timesteps, force_kernel=True)
    )
    assert out_k1.shape == (n_timesteps, embedding_dim)
    assert bool(jnp.array_equal(out_k1, ref))

    # 3) Force the multi-descriptor (concurrent DMA) path to exercise it too.
    out_k2 = jax.block_until_ready(
        learned_pos_embedding(
            pos_emb_weight, n_timesteps, force_kernel=True, num_dma_chunks=2
        )
    )
    assert out_k2.shape == (n_timesteps, embedding_dim)
    assert bool(jnp.array_equal(out_k2, ref))

    # 4) Full-table fast path returns the table with zero bytes moved.
    out_full = jax.block_until_ready(
        learned_pos_embedding(pos_emb_weight, max_seq_length)
    )
    assert bool(jnp.array_equal(out_full, pos_emb_weight))

    print("KERNEL_OK")
</pallas_src>

<mosaic_0001>
module attributes {stable_mosaic.version = 11 : i64} {
  func.func @kernel(%arg0: memref<16x32xf32, #tpu.memory_space<any>>, %arg1: memref<8x32xf32, #tpu.memory_space<any>>, %arg2: memref<1x!tpu.dma_semaphore, #tpu.memory_space<semaphore_mem>>) attributes {dimension_semantics = [], scalar_prefetch = 0 : i64, scratch_operands = 1 : i64, tpu.core_type = #tpu.core_type<tc>} {
    %c0_i32 = arith.constant 0 : i32
    %c0_i32_0 = arith.constant 0 : i32
    %c0_i32_1 = arith.constant 0 : i32
    %0 = tpu.memref_slice %arg0[%c0_i32_0, %c0_i32_1] : memref<16x32xf32, #tpu.memory_space<any>> -> memref<8x32xf32, #tpu.memory_space<any>>
    %c0_i32_2 = arith.constant 0 : i32
    %c0_i32_3 = arith.constant 0 : i32
    %1 = tpu.memref_slice %arg1[%c0_i32_2, %c0_i32_3] : memref<8x32xf32, #tpu.memory_space<any>> -> memref<8x32xf32, #tpu.memory_space<any>>
    %2 = tpu.memref_slice %arg2[%c0_i32] : memref<1x!tpu.dma_semaphore, #tpu.memory_space<semaphore_mem>> -> memref<1x!tpu.dma_semaphore, #tpu.memory_space<semaphore_mem>>
    %3 = tpu.memref_squeeze %2 : memref<1x!tpu.dma_semaphore, #tpu.memory_space<semaphore_mem>> -> memref<!tpu.dma_semaphore, #tpu.memory_space<semaphore_mem>>
    tpu.enqueue_dma source(%0 : memref<8x32xf32, #tpu.memory_space<any>>) target(%1 : memref<8x32xf32, #tpu.memory_space<any>>) target_semaphore(%3 : memref<!tpu.dma_semaphore, #tpu.memory_space<semaphore_mem>>)
    %c0_i32_4 = arith.constant 0 : i32
    %c0_i32_5 = arith.constant 0 : i32
    %c0_i32_6 = arith.constant 0 : i32
    %4 = tpu.memref_slice %arg0[%c0_i32_5, %c0_i32_6] : memref<16x32xf32, #tpu.memory_space<any>> -> memref<8x32xf32, #tpu.memory_space<any>>
    %c0_i32_7 = arith.constant 0 : i32
    %c0_i32_8 = arith.constant 0 : i32
    %5 = tpu.memref_slice %arg1[%c0_i32_7, %c0_i32_8] : memref<8x32xf32, #tpu.memory_space<any>> -> memref<8x32xf32, #tpu.memory_space<any>>
    %6 = tpu.memref_slice %arg2[%c0_i32_4] : memref<1x!tpu.dma_semaphore, #tpu.memory_space<semaphore_mem>> -> memref<1x!tpu.dma_semaphore, #tpu.memory_space<semaphore_mem>>
    %7 = tpu.memref_squeeze %6 : memref<1x!tpu.dma_semaphore, #tpu.memory_space<semaphore_mem>> -> memref<!tpu.dma_semaphore, #tpu.memory_space<semaphore_mem>>
    tpu.wait_dma2 semaphore(%7 : memref<!tpu.dma_semaphore, #tpu.memory_space<semaphore_mem>>) src(%4 : memref<8x32xf32, #tpu.memory_space<any>>) dst(%5 : memref<8x32xf32, #tpu.memory_space<any>>)
    return
  }
}

</mosaic_0001>

<llo_original>
// kernel: tpu_custom_call.1
$region0: #{tpu_custom_call.1}
  #allocation0 [shape = 'u32[]', space=smem, size = 0x4, offset = 0x4, fixed_abs, tag = 'smem constant byte address 0x4 - core index']
  #allocation1 [shape = 'u32[72,128]{1,0:T(1,128)}', space=vmem, size = 0x9000, scoped, tag = 'internal scratch']
  #allocation2 [shape = 's32[1]{0}', space=sflag, size = 0x4, scoped, tag = 'scratch operand']
  #allocation3 [shape = 's32[]', space=sflag, size = 0x4, offset = 0, fixed_abs, tag = 'sflag constant byte address 0x0 - dummy sync flag']
  #allocation4 [shape = 'u32[0]{0}', space=smem, size = 0, offset = 0, fixed_abs, tag = 'smem constant byte address 0x0 - null']
  %s0 = inlined_call_operand.hbm [shape: f32[16,32], index: 0, kind: input, shape index: {}]
  %s1 = inlined_call_operand.hbm [shape: f32[8,32], index: 1, kind: output, shape index: {}]
  %s2 = sld [smem:[#allocation0]]
  $region2: #{tpu_custom_call.1} parent=0
    _
  %s4 = ssub.s32 1, %s2
  %s5 = scalar_select 0, %s4, %s2
  %s7 = sshll.u32 1, 14
  %s8 = sxor.u32 4294967295, %s7
  %s10 = sshll.u32 %s0, 4
  %s11 = int_to_ptr.hbm [resolvable:$true] %s10
  %s12 = sshll.u32 %s1, 4
  %s13 = int_to_ptr.hbm [resolvable:$true] %s12
  %16 = dma.general %s11, 128, %s13, [#allocation2], [#allocation3], [#allocation4], 0, 0
  %s17 = smul.u32 8, 1
  %s18 = sshll.u32 %s17, 4
  %19 = dma.done [#allocation2], %s18
  %20 = vsyncmov [#allocation2]
  %s21 = vpop.sfrf %20
  %p22 = scmp.eq.s32.totalorder %s21, 0
  %p23 = pneg %p22
  %25 = shalt.err (%p23)

</llo_original>
